<compile_context>
chip_gen: v6e
topology: v6e:2x2x1
jax: 0.10.0
libtpu: 0.0.40
codegen_flags: <defaults>
</compile_context>

<pallas_src>
import functools

import jax
import jax.numpy as jnp
from jax.experimental import pallas as pl
from jax.experimental.pallas import tpu as pltpu


# ----------------------------------------------------------------------------
# Kernel
# ----------------------------------------------------------------------------
def _rope_kernel(x_ref, cos_ref, sine_ref, sino_ref, o_ref, *,
                 head_rep, roll_is_numpy):
    """out[r, j] = x[r,j]*cos[j%w] + x[r,j^1]*(+sin at odd j / -sin at even j).

    x_ref / o_ref : [tl, C]   C = num_heads * head_dim (interleaved pairs)
    cos_ref       : [tl, w]   w = C // head_rep; pair cosine, duplicated lanes
    sine_ref      : [tl, w]   -sin on even lanes, 0 on odd lanes
    sino_ref      : [tl, w]   +sin on odd lanes, 0 on even lanes
    """
    x = x_ref[...].astype(jnp.float32)
    ncols = x.shape[-1]

    def bcast(t):
        # Broadcast the narrow table across the folded-head lane groups.
        return t if head_rep == 1 else jnp.concatenate([t] * head_rep, axis=-1)

    c = bcast(cos_ref[...])
    se = bcast(sine_ref[...])
    so = bcast(sino_ref[...])

    # Pair swap via two XLU lane rotations; parity masking is baked into the
    # se/so tables (zeros), so wrap-around lanes never contribute.
    r_fwd = pltpu.roll(x, 1, 1)          # numpy convention: lane j <- x[j - 1]
    r_bwd = pltpu.roll(x, ncols - 1, 1)  # numpy convention: lane j <- x[j + 1]
    if not roll_is_numpy:                # static bool, resolved by one-time probe
        r_fwd, r_bwd = r_bwd, r_fwd

    o_ref[...] = (x * c + r_fwd * so + r_bwd * se).astype(o_ref.dtype)


@functools.lru_cache(maxsize=None)
def _roll_follows_numpy_convention() -> bool:
    """Pin down pltpu.roll's rotation direction with a one-time tiny kernel.

    Cached, so it runs once (at first wrapper call) and never again; it uses
    only concrete inputs so it also resolves eagerly even if the wrapper is
    first invoked under jit.
    """
    def probe(p_ref, o_ref):
        o_ref[...] = pltpu.roll(p_ref[...], 1, 1)

    xp = jnp.arange(8 * 128, dtype=jnp.float32).reshape(8, 128)
    y = pl.pallas_call(probe, out_shape=jax.ShapeDtypeStruct((8, 128), jnp.float32))(xp)
    y = jax.block_until_ready(y)
    fwd = bool(jnp.array_equal(y, jnp.roll(xp, 1, axis=1)))
    bwd = bool(jnp.array_equal(y, jnp.roll(xp, -1, axis=1)))
    if not (fwd or bwd):
        raise RuntimeError("pltpu.roll produced an unexpected rotation")
    return fwd


# ----------------------------------------------------------------------------
# Hoisted, cached table construction (plain JAX, tiny, once per shape/base)
# ----------------------------------------------------------------------------
def _table_heads(num_heads, head_dim):
    """How many heads to pre-fold into the table so its width is ~128 lanes.

    Keeps the table tiny in HBM while letting the in-kernel broadcast work on
    lane-aligned chunks whenever possible."""
    if head_dim >= 128:
        return 1
    best = 1
    for d in range(1, num_heads + 1):
        if num_heads % d == 0 and d * head_dim <= 128:
            best = d
    return best


@functools.lru_cache(maxsize=32)
def _rope_tables(seq_len, head_dim, base, l_pad, tile_heads):
    """cos / sin_even / sin_odd tables of shape [l_pad, tile_heads*head_dim] f32."""
    half = head_dim // 2
    pos = jnp.arange(seq_len, dtype=jnp.float32)[:, None]             # [L, 1]
    freq_seq = jnp.arange(half, dtype=jnp.float32)
    freq = (base ** (-2.0 * freq_seq / head_dim))[None, :]            # [1, half]
    angle = pos * freq                                                # [L, half]
    sin = jnp.sin(angle)[..., None]                                   # [L, half, 1]
    cos = jnp.cos(angle)[..., None]
    # Exact mirror of the PyTorch permute(1,0,2).reshape(1, L, 1, half) step
    # (intentionally NOT "corrected" -- we match the module's semantics).
    sin_t = jnp.transpose(sin, (1, 0, 2)).reshape(seq_len, half)      # [L, half]
    cos_t = jnp.transpose(cos, (1, 0, 2)).reshape(seq_len, half)

    # Interleaved lane layout (pairs (2p, 2p+1)) with parity/sign pre-folded:
    #   cos_full[l, 2p] = cos_full[l, 2p+1] = cos_t[l, p]
    #   sin_even[l, 2p] = -sin_t[l, p], 0 on odd lanes
    #   sin_odd [l, 2p+1] = +sin_t[l, p], 0 on even lanes
    cos_full = jnp.repeat(cos_t, 2, axis=-1)                          # [L, hd]
    sin_full = jnp.repeat(sin_t, 2, axis=-1)                          # [L, hd]
    even = (jnp.arange(head_dim, dtype=jnp.int32) % 2) == 0
    sin_even = jnp.where(even[None, :], -sin_full, 0.0)
    sin_odd = jnp.where(even[None, :], 0.0, sin_full)

    if tile_heads > 1:  # fold a few heads so table width is lane-friendly
        cos_full = jnp.tile(cos_full, (1, tile_heads))
        sin_even = jnp.tile(sin_even, (1, tile_heads))
        sin_odd = jnp.tile(sin_odd, (1, tile_heads))

    if l_pad != seq_len:  # pad rows for awkward seq_len; padded rows unused
        pad = ((0, l_pad - seq_len), (0, 0))
        cos_full = jnp.pad(cos_full, pad)
        sin_even = jnp.pad(sin_even, pad)
        sin_odd = jnp.pad(sin_odd, pad)
    return cos_full, sin_even, sin_odd


# ----------------------------------------------------------------------------
# Tiling / VMEM budgeting
# ----------------------------------------------------------------------------
def _sublane_multiple(dtype):
    # Sub-32-bit dtypes pack rows along sublanes: 8 (f32) / 16 (bf16) / 32 (8-bit).
    return {4: 8, 2: 16, 1: 32}.get(jnp.dtype(dtype).itemsize, 8)


@functools.lru_cache(maxsize=1)
def _vmem_limit_bytes():
    """Generation-aware scoped-VMEM request (~100 MiB v5e/v6e, ~50 MiB v7x)."""
    try:
        cap = int(pltpu.get_tpu_info().vmem_capacity_bytes)
    except Exception:
        cap = 64 << 20  # conservative default (fits every generation)
    return min(int(cap * 0.78), 100 << 20)


def _pick_seq_tile(l_pad, bsz, n_cols, table_cols, x_itemsize, sub, vmem_limit):
    """Largest power-of-two multiple of `sub` dividing l_pad whose footprint
    (double-buffered x in/out + tables + ~6 full-width f32 in-kernel
    temporaries) fits ~80% of the requested scoped VMEM."""
    row_bytes = (2 * 2 * n_cols * x_itemsize       # 2 buffers x (x_in + out)
                 + 2 * 3 * table_cols * 4          # 2 buffers x 3 f32 tables
                 + 6 * n_cols * 4)                 # in-kernel f32 temporaries
    cap_rows = max(sub, int(0.8 * vmem_limit) // row_bytes)
    if bsz == 1:
        # Keep >=2 grid points so v7x's two TensorCores both get work.
        cap_rows = min(cap_rows, max(sub, l_pad // 2))
    tl = sub
    while tl * 2 <= cap_rows and l_pad % (tl * 2) == 0:
        tl *= 2
    return tl


# ----------------------------------------------------------------------------
# Public forward
# ----------------------------------------------------------------------------
def rotary_positional_embedding(x, base=10000.0):
    """RoPE forward matching the PyTorch module.  x: [B, L, H, head_dim]."""
    bsz, seq_len, num_heads, head_dim = x.shape
    if head_dim % 2:
        raise ValueError("head_dim must be even")
    n_cols = num_heads * head_dim

    sub = _sublane_multiple(x.dtype)
    l_pad = pl.cdiv(seq_len, sub) * sub

    tile_heads = _table_heads(num_heads, head_dim)
    head_rep = num_heads // tile_heads
    table_cols = tile_heads * head_dim
    cos_t, sin_e, sin_o = _rope_tables(seq_len, head_dim, float(base),
                                       int(l_pad), tile_heads)

    x3 = x.reshape(bsz, seq_len, n_cols)   # contiguous merge -> free; lanes=H*hd
    if l_pad != seq_len:
        x3 = jnp.pad(x3, ((0, 0), (0, l_pad - seq_len), (0, 0)))

    vmem_limit = _vmem_limit_bytes()
    tl = _pick_seq_tile(l_pad, bsz, n_cols, table_cols,
                        jnp.dtype(x.dtype).itemsize, sub, vmem_limit)
    grid = (l_pad // tl, bsz)               # batch innermost: table blocks are
                                            # reused (not re-DMA'd) across it.

    kernel = functools.partial(
        _rope_kernel, head_rep=head_rep,
        roll_is_numpy=_roll_follows_numpy_convention())

    out = pl.pallas_call(
        kernel,
        out_shape=jax.ShapeDtypeStruct((bsz, l_pad, n_cols), x.dtype),
        grid=grid,
        in_specs=[
            pl.BlockSpec((None, tl, n_cols), lambda i, b: (b, i, 0)),
            pl.BlockSpec((tl, table_cols), lambda i, b: (i, 0)),
            pl.BlockSpec((tl, table_cols), lambda i, b: (i, 0)),
            pl.BlockSpec((tl, table_cols), lambda i, b: (i, 0)),
        ],
        out_specs=pl.BlockSpec((None, tl, n_cols), lambda i, b: (b, i, 0)),
        compiler_params=pltpu.CompilerParams(
            dimension_semantics=("parallel", "parallel"),
            vmem_limit_bytes=int(vmem_limit)),
    )(x3, cos_t, sin_e, sin_o)

    if l_pad != seq_len:
        out = out[:, :seq_len, :]
    return out.reshape(bsz, seq_len, num_heads, head_dim)


# ----------------------------------------------------------------------------
# Pure-JAX reference (line-by-line mirror of the PyTorch module)
# ----------------------------------------------------------------------------
def rope_reference(x, base=10000.0):
    bsz, seq_len, nh, hd = x.shape
    half = hd // 2
    pos = jnp.arange(seq_len, dtype=x.dtype)[:, None]
    freq_seq = jnp.arange(half, dtype=x.dtype)
    freq = (base ** (-2.0 * freq_seq / hd))[None, :]
    angle = pos * freq
    sin = jnp.sin(angle)[..., None]
    cos = jnp.cos(angle)[..., None]
    sin = jnp.transpose(sin, (1, 0, 2)).reshape(1, seq_len, 1, half)
    cos = jnp.transpose(cos, (1, 0, 2)).reshape(1, seq_len, 1, half)
    x0 = x[..., 0::2]
    x1 = x[..., 1::2]
    rx0 = x0 * cos - x1 * sin
    rx1 = x1 * cos + x0 * sin
    return jnp.stack([rx0, rx1], axis=-1).reshape(bsz, seq_len, nh, hd)


# ----------------------------------------------------------------------------
if __name__ == "__main__":
    k1, k2, k3 = jax.random.split(jax.random.PRNGKey(0), 3)

    # Small demo shape [batch, seq_len, num_heads, head_dim]; H*hd = 128 so the
    # kernel's lane dimension is exactly one vreg wide.
    B, L, H, HD = 2, 8, 4, 32
    x = jax.random.normal(k1, (B, L, H, HD), jnp.float32)
    out = jax.block_until_ready(rotary_positional_embedding(x))
    ref = rope_reference(x)
    assert out.shape == x.shape, out.shape
    assert bool(jnp.all(jnp.isfinite(out)))
    assert bool(jnp.allclose(out, ref, atol=1e-5, rtol=1e-5)), (
        float(jnp.max(jnp.abs(out - ref))))

    # Larger shape: exercises the tiled (seq, batch) grid and the head-narrow
    # table broadcast (head_rep = 16).
    B2, L2, H2, HD2 = 2, 256, 16, 128
    x2 = jax.random.normal(k2, (B2, L2, H2, HD2), jnp.float32)
    out2 = jax.block_until_ready(rotary_positional_embedding(x2))
    ref2 = rope_reference(x2)
    assert bool(jnp.allclose(out2, ref2, atol=1e-5, rtol=1e-5)), (
        float(jnp.max(jnp.abs(out2 - ref2))))

    # Awkward seq_len (not a multiple of 8) + bsz == 1: exercises the padding
    # path and the >=2-grid-steps guarantee.
    B3, L3, H3, HD3 = 1, 12, 4, 32
    x3 = jax.random.normal(k3, (B3, L3, H3, HD3), jnp.float32)
    out3 = jax.block_until_ready(rotary_positional_embedding(x3))
    ref3 = rope_reference(x3)
    assert out3.shape == x3.shape
    assert bool(jnp.allclose(out3, ref3, atol=1e-5, rtol=1e-5)), (
        float(jnp.max(jnp.abs(out3 - ref3))))

    print("KERNEL_OK")
</pallas_src>

<mosaic_0001>
module attributes {stable_mosaic.version = 11 : i64} {
  func.func @probe(%arg0: memref<8x128xf32, #tpu.memory_space<vmem>>, %arg1: memref<8x128xf32, #tpu.memory_space<vmem>>) attributes {dimension_semantics = [], scalar_prefetch = 0 : i64, scratch_operands = 0 : i64, tpu.core_type = #tpu.core_type<tc>} {
    %c0 = arith.constant 0 : index
    %c0_0 = arith.constant 0 : index
    %0 = vector.load %arg0[%c0, %c0_0] : memref<8x128xf32, #tpu.memory_space<vmem>>, vector<8x128xf32>
    %c1_i32 = arith.constant 1 : i32
    %1 = tpu.dynamic_rotate %0 by %c1_i32 dim 1 : vector<8x128xf32>, i32 -> vector<8x128xf32>
    %c0_1 = arith.constant 0 : index
    %c0_2 = arith.constant 0 : index
    %2 = vector.load %arg1[%c0_1, %c0_2] : memref<8x128xf32, #tpu.memory_space<vmem>>, vector<8x128xf32>
    tpu.vector_store %arg1[%c0_1, %c0_2], %1 {strides = array<i32>} : memref<8x128xf32, #tpu.memory_space<vmem>>, vector<8x128xf32>,
    return
  }
}

</mosaic_0001>

<llo_original>
// kernel: tpu_custom_call.1
$region0: #{tpu_custom_call.1}
  #allocation0 [shape = 'u32[]', space=smem, size = 0x4, offset = 0x4, fixed_abs, tag = 'smem constant byte address 0x4 - core index']
  #allocation1 [shape = 'u32[144,128]{1,0:T(1,128)}', space=vmem, size = 0x12000, scoped, tag = 'internal scratch']
  %s0 = inlined_call_operand.hbm [shape: f32[8,128], index: 0, kind: input, shape index: {}]
  %s1 = inlined_call_operand.hbm [shape: f32[8,128], index: 1, kind: output, shape index: {}]
  %s2 = sld [smem:[#allocation0]]
  $region18: #{tpu_custom_call.1} parent=0
    _
  %s4 = ssub.s32 1, %s2
  %s5 = scalar_select 0, %s4, %s2
  $region1: #{tpu_custom_call.1} parent=0
    #allocation2 [shape = 'u8[4096]{0}', space=vmem, size = 0x1000, scoped, tag = 'input window, operand 0, single buffered']
    #allocation3 [shape = 's32[1]{0}', space=sflag, size = 0x4, scoped, tag = 'scoped memory for tpu_custom_call.1']
    #allocation4 [shape = 's32[1]{0}', space=sflag, size = 0x4, scoped, tag = 'scoped memory for tpu_custom_call.1']
    #allocation5 [shape = 'u8[4096]{0}', space=vmem, size = 0x1000, scoped, tag = 'output window, operand 0, single buffered']
    %6 = vsyncpa [#allocation3], 0
    %7 = vsyncpa [#allocation4], 0
    // Predicated region
    $region2: #{tpu_custom_call.1} parent=1 // pred_check
      _
    $region3: #{tpu_custom_call.1} parent=1 // pred_check_branch
      %9 = sbr.rel (0) target = $region5
    $region4: #{tpu_custom_call.1} parent=1 // pred_region
      %s11 = ssub.s32 128, 128
      %12 = vsyncadd [#allocation3], %s11
      %s14 = sshll.u32 [#allocation2], 4
      %s15 = int_to_ptr.vmem [resolvable:$true] %s14
      %17 = dma.hbm_to_vmem [thread:$0]  %s0, 128, %s15, [#allocation3]
    $region5: #{tpu_custom_call.1} parent=1 // pred_fallthru
      _
    // Predicated region
    $region6: #{tpu_custom_call.1} parent=1 // pred_check
      _
    $region7: #{tpu_custom_call.1} parent=1 // pred_check_branch
      %19 = sbr.rel (0) target = $region9
    $region8: #{tpu_custom_call.1} parent=1 // pred_region
      %20 = dma.done [#allocation3], 128
    $region9: #{tpu_custom_call.1} parent=1 // pred_fallthru
      _
    %v21 = vld [vmem:[#allocation2] sm:$0xff]
    %22 = vrot.lane.b32.xlu0 %v21, 1
    %v23 = vpop.permute.xlu0 %22
    %24 = vst [vmem:[#allocation5] sm:$0xff] %v23
    // Predicated region
    $region10: #{tpu_custom_call.1} parent=1 // pred_check
      _
    $region11: #{tpu_custom_call.1} parent=1 // pred_check_branch
      %26 = sbr.rel (0) target = $region13
    $region12: #{tpu_custom_call.1} parent=1 // pred_region
      %s28 = ssub.s32 128, 128
      %29 = vsyncadd [#allocation4], %s28
      %s31 = sshll.u32 [#allocation5], 4
      %s32 = int_to_ptr.vmem [resolvable:$true] %s31
      %34 = dma.vmem_to_hbm [thread:$0]  %s32, 128, %s1, [#allocation4]
    $region13: #{tpu_custom_call.1} parent=1 // pred_fallthru
      _
    // Predicated region
    $region14: #{tpu_custom_call.1} parent=1 // pred_check
      _
    $region15: #{tpu_custom_call.1} parent=1 // pred_check_branch
      %36 = sbr.rel (0) target = $region17
    $region16: #{tpu_custom_call.1} parent=1 // pred_region
      %37 = dma.done [#allocation4], 128
    $region17: #{tpu_custom_call.1} parent=1 // pred_fallthru
      _
    %38 = vsyncpa [#allocation3], 1
    %39 = vsyncpa [#allocation4], 1

</llo_original>
